<compile_context>
chip_gen: v5e
topology: v5e:2x2
jax: 0.10.0
libtpu: 0.0.40
codegen_flags: <defaults>
</compile_context>

<pallas_src>
import functools

import jax
import jax.numpy as jnp
from jax import lax
from jax.experimental import pallas as pl
from jax.experimental.pallas import tpu as pltpu

LOSS_SCALING = 1000000000.0


# --------------------------------------------------------------- helpers ---

def _cdiv(a, b):
    return -(-a // b)


def _vmem_capacity_bytes():
    try:
        return int(pltpu.get_tpu_info().vmem_capacity_bytes)
    except Exception:
        # Conservative fallback: v7x has 64 MiB per TensorCore.
        return 64 * 1024 * 1024


def _num_tensorcores():
    """Best-effort TensorCore count (2 on v7x, 1 on v5e/v6e). Defaults to 1."""
    n = 1
    try:
        info = pltpu.get_tpu_info()
        for name in ("num_tensorcores", "tensorcore_count", "num_cores",
                     "cores_per_chip", "num_cores_per_chip"):
            v = getattr(info, name, None)
            if v:
                n = int(v)
                break
    except Exception:
        n = 1
    return max(1, min(n, 2))


def _choose_tiling(M, K, elem_bytes, num_tc):
    """Pick the K-tile width tk, K-tile counts and a VMEM limit.

    Working set per core: resident (M, M) f32 gram + double-buffered (M, tk)
    feature tiles.  tk is bounded only by the VMEM budget (no artificial cap).
    """
    cap = _vmem_capacity_bytes()
    budget = (3 * cap) // 4                        # ~75%: headroom for internal scratch
    out_bufs = 2 if num_tc > 1 else 1              # single-buffered when index_map const
    fixed = out_bufs * M * M * 4
    avail = budget - fixed

    if avail < 2 * M * 128 * elem_bytes:
        # TODO(synk): output-tiled (i, j, k) gram path for very large M.
        raise NotImplementedError(
            f"Resident ({M}, {M}) gram does not fit the VMEM budget "
            f"({budget} bytes); an output-tiled path is required.")

    tk_max = avail // (2 * M * elem_bytes)
    if tk_max >= K:
        tk = K                                     # single full-width tile
    else:
        tk = (tk_max // 128) * 128                 # lane-aligned streamed tile

    n_k = _cdiv(K, tk)
    n_split = num_tc if (num_tc > 1 and n_k >= num_tc) else 1
    n_kps = _cdiv(n_k, n_split)                    # K tiles handled per split/core

    required = fixed + 2 * M * tk * elem_bytes
    vmem_limit = int(min(cap, max(32 * 1024 * 1024, required + 16 * 1024 * 1024)))
    return tk, n_k, n_split, n_kps, vmem_limit


# --------------------------------------------------------------- kernel ----

def _gram_kernel(feat_ref, g_ref, *, K, tk, n_kps, inv_denom, ragged):
    """Accumulate F_tile @ F_tile.T into the resident (M, M) output block."""
    s = pl.program_id(0)           # TensorCore split index
    k = pl.program_id(1)           # K-tile index within this split

    @pl.when(k == 0)
    def _init():
        g_ref[...] = jnp.zeros_like(g_ref)

    f = feat_ref[...]              # (M, tk), bf16 (or f32)

    def _accum(fv):
        # Contract the lane dim of both operands (F @ F.T) -> no transposed copy.
        g_ref[...] += lax.dot_general(
            fv, fv,
            dimension_numbers=(((1,), (1,)), ((), ())),
            preferred_element_type=jnp.float32)

    if ragged:
        col_start = (s * n_kps + k) * tk   # logical (unclamped) column start

        @pl.when(col_start + tk <= K)
        def _full_tile():
            _accum(f)

        @pl.when(col_start + tk > K)
        def _ragged_tile():
            # Partial / phantom tile: zero lanes >= K (OOB lanes hold stale data).
            col = col_start + lax.broadcasted_iota(jnp.int32, f.shape, 1)
            _accum(jnp.where(col < K, f, jnp.zeros_like(f)))
    else:
        _accum(f)

    @pl.when(k == pl.num_programs(1) - 1)
    def _finalize():
        g_ref[...] = g_ref[...] * inv_denom


# -------------------------------------------------------------- wrappers ---

def gram_matrix_pallas(x, feature_dtype=jnp.bfloat16):
    """G = (F @ F.T) / (a*b*c*d) for x of shape (a, b, c, d)."""
    a, b, c, d = x.shape
    M, K = a * b, c * d
    denom = float(a * b * c * d)

    feats = x.reshape(M, K)
    if feats.dtype != jnp.dtype(feature_dtype):
        feats = feats.astype(feature_dtype)        # bf16 stream, f32 accumulation
    elem_bytes = jnp.dtype(feature_dtype).itemsize

    num_tc = _num_tensorcores()
    tk, n_k, n_split, n_kps, vmem_limit = _choose_tiling(M, K, elem_bytes, num_tc)
    # Masking needed iff the last K tile is partial or split-rounding adds phantom tiles.
    ragged = (n_k * tk != K) or (n_split * n_kps != n_k)

    kernel = functools.partial(
        _gram_kernel, K=K, tk=tk, n_kps=n_kps,
        inv_denom=1.0 / denom, ragged=ragged)

    def feat_index_map(s, k):
        # Clamp phantom tiles (from split rounding) to the last valid K tile;
        # their contribution is zeroed in-kernel by the ragged mask.
        return (0, jnp.minimum(s * n_kps + k, n_k - 1))

    cost = pl.CostEstimate(
        flops=2 * M * M * K,
        transcendentals=0,
        bytes_accessed=M * K * elem_bytes + n_split * M * M * 4)

    partials = pl.pallas_call(
        kernel,
        out_shape=jax.ShapeDtypeStruct((n_split, M, M), jnp.float32),
        grid_spec=pltpu.PrefetchScalarGridSpec(
            num_scalar_prefetch=0,
            grid=(n_split, n_kps),
            in_specs=[pl.BlockSpec((M, tk), feat_index_map)],
            out_specs=pl.BlockSpec((None, M, M), lambda s, k: (s, 0, 0)),
        ),
        compiler_params=pltpu.CompilerParams(
            dimension_semantics=("parallel", "arbitrary"),
            vmem_limit_bytes=vmem_limit),
        cost_estimate=cost,
    )(feats)

    # Per-core partial grams summed in XLA (O(M^2), negligible vs the M*K stream).
    return jnp.sum(partials, axis=0)


def texture_loss_pallas(x, target_gram, feature_dtype=jnp.bfloat16):
    """1e9 * mean((gram(x) - target_gram)^2); MSE epilogue runs in plain XLA."""
    g = gram_matrix_pallas(x, feature_dtype=feature_dtype)
    diff = g - target_gram.astype(jnp.float32)
    return LOSS_SCALING * jnp.mean(diff * diff)


class TextureLoss:
    """Mirrors the PyTorch module: stores the target gram at init; __call__
    returns the input unchanged and records the scaled MSE loss in `self.loss`."""

    def __init__(self, target_feature, feature_dtype=jnp.bfloat16):
        self.target = jax.block_until_ready(
            gram_matrix_pallas(target_feature, feature_dtype=feature_dtype))
        self.loss = None
        self._loss_fn = jax.jit(
            functools.partial(texture_loss_pallas, feature_dtype=feature_dtype))

    def __call__(self, x):
        self.loss = self._loss_fn(x, self.target)
        return x


# ------------------------------------------------------------------ main ---

def _gram_ref(x, dtype):
    a, b, c, d = x.shape
    f = x.reshape(a * b, c * d).astype(dtype).astype(jnp.float32)
    return (f @ f.T) / float(a * b * c * d)


if __name__ == "__main__":
    key = jax.random.PRNGKey(0)
    k_tgt, k_in = jax.random.split(key)

    # NCHW, small shapes: a=2, b=4, c=d=16  ->  M = 8, K = 256
    target_feature = jax.random.normal(k_tgt, (2, 4, 16, 16), dtype=jnp.float32)
    x = jax.random.normal(k_in, (2, 4, 16, 16), dtype=jnp.float32)

    module = TextureLoss(target_feature)
    out = module(x)
    out = jax.block_until_ready(out)
    loss = jax.block_until_ready(module.loss)

    # References: (a) same bf16 feature quantization as the kernel (tight),
    #             (b) pure f32 PyTorch-equivalent reference (loose).
    g_q = _gram_ref(x, jnp.bfloat16)
    t_q = _gram_ref(target_feature, jnp.bfloat16)
    loss_q = LOSS_SCALING * jnp.mean((g_q - t_q) ** 2)

    g_f = _gram_ref(x, jnp.float32)
    t_f = _gram_ref(target_feature, jnp.float32)
    loss_f = LOSS_SCALING * jnp.mean((g_f - t_f) ** 2)

    assert out.shape == x.shape and bool(jnp.all(out == x))
    assert jnp.allclose(module.target, t_q, rtol=5e-3, atol=1e-6), (module.target, t_q)
    assert jnp.allclose(loss, loss_q, rtol=5e-3), (loss, loss_q)
    assert jnp.allclose(loss, loss_f, rtol=5e-2), (loss, loss_f)

    print("KERNEL_OK")
</pallas_src>

<mosaic_0001>
module attributes {stable_mosaic.version = 11 : i64} {
  func.func @_gram_kernel(%arg0: i32, %arg1: i32, %arg2: memref<8x256xbf16, #tpu.memory_space<vmem>>, %arg3: memref<1x8x8xf32, #tpu.memory_space<vmem>>) attributes {dimension_semantics = [#tpu.dimension_semantics<parallel>, #tpu.dimension_semantics<arbitrary>], iteration_bounds = array<i64: 1, 1>, scalar_prefetch = 0 : i64, scratch_operands = 0 : i64, tpu.core_type = #tpu.core_type<tc>, window_params = [{transform_indices = @transform_0, window_bounds = array<i64: 8, 256>}, {transform_indices = @transform_1, window_bounds = array<i64: 1, 8, 8>}]} {
    %c0_i32 = arith.constant 0 : i32
    %0 = arith.cmpi eq, %arg1, %c0_i32 : i32
    %1 = arith.extui %0 : i1 to i32
    %c0_i32_0 = arith.constant 0 : i32
    %2 = arith.cmpi ne, %1, %c0_i32_0 : i32
    scf.if %2 {
      %cst_10 = arith.constant 0.000000e+00 : f32
      %14 = vector.broadcast %cst_10 : f32 to vector<8x8xf32>
      %c0_11 = arith.constant 0 : index
      %c0_12 = arith.constant 0 : index
      %c0_13 = arith.constant 0 : index
      %15 = vector.load %arg3[%c0_11, %c0_12, %c0_13] : memref<1x8x8xf32, #tpu.memory_space<vmem>>, vector<1x8x8xf32>
      %16 = vector.shape_cast %15 : vector<1x8x8xf32> to vector<8x8xf32>
      %17 = vector.shape_cast %14 : vector<8x8xf32> to vector<1x8x8xf32>
      tpu.vector_store %arg3[%c0_11, %c0_12, %c0_13], %17 {strides = array<i32>} : memref<1x8x8xf32, #tpu.memory_space<vmem>>, vector<1x8x8xf32>,
    } else {
    }
    %c0 = arith.constant 0 : index
    %c0_1 = arith.constant 0 : index
    %3 = vector.load %arg2[%c0, %c0_1] : memref<8x256xbf16, #tpu.memory_space<vmem>>, vector<8x256xbf16>
    %c0_2 = arith.constant 0 : index
    %c0_3 = arith.constant 0 : index
    %c0_4 = arith.constant 0 : index
    %4 = vector.load %arg3[%c0_2, %c0_3, %c0_4] : memref<1x8x8xf32, #tpu.memory_space<vmem>>, vector<1x8x8xf32>
    %5 = vector.shape_cast %4 : vector<1x8x8xf32> to vector<8x8xf32>
    %cst = arith.constant dense<0.000000e+00> : vector<8x8xf32>
    %6 = tpu.matmul %3, %3, %cst {dimension_numbers = #tpu.dot_dimension_numbers<[1], [1], [0], [0], [0, 0, 1, 0], [], []>} : vector<8x256xbf16>, vector<8x256xbf16>, vector<8x8xf32> -> vector<8x8xf32>
    %7 = arith.addf %5, %6 : vector<8x8xf32>
    %c0_5 = arith.constant 0 : index
    %c0_6 = arith.constant 0 : index
    %c0_7 = arith.constant 0 : index
    %8 = vector.load %arg3[%c0_5, %c0_6, %c0_7] : memref<1x8x8xf32, #tpu.memory_space<vmem>>, vector<1x8x8xf32>
    %9 = vector.shape_cast %8 : vector<1x8x8xf32> to vector<8x8xf32>
    %10 = vector.shape_cast %7 : vector<8x8xf32> to vector<1x8x8xf32>
    tpu.vector_store %arg3[%c0_5, %c0_6, %c0_7], %10 {strides = array<i32>} : memref<1x8x8xf32, #tpu.memory_space<vmem>>, vector<1x8x8xf32>,
    %c0_i32_8 = arith.constant 0 : i32
    %11 = arith.cmpi eq, %arg1, %c0_i32_8 : i32
    %12 = arith.extui %11 : i1 to i32
    %c0_i32_9 = arith.constant 0 : i32
    %13 = arith.cmpi ne, %12, %c0_i32_9 : i32
    scf.if %13 {
      %c0_10 = arith.constant 0 : index
      %c0_11 = arith.constant 0 : index
      %c0_12 = arith.constant 0 : index
      %14 = vector.load %arg3[%c0_10, %c0_11, %c0_12] : memref<1x8x8xf32, #tpu.memory_space<vmem>>, vector<1x8x8xf32>
      %15 = vector.shape_cast %14 : vector<1x8x8xf32> to vector<8x8xf32>
      %cst_13 = arith.constant 4.8828125E-4 : f32
      %16 = vector.broadcast %cst_13 : f32 to vector<8x8xf32>
      %17 = arith.mulf %15, %16 : vector<8x8xf32>
      %c0_14 = arith.constant 0 : index
      %c0_15 = arith.constant 0 : index
      %c0_16 = arith.constant 0 : index
      %18 = vector.load %arg3[%c0_14, %c0_15, %c0_16] : memref<1x8x8xf32, #tpu.memory_space<vmem>>, vector<1x8x8xf32>
      %19 = vector.shape_cast %18 : vector<1x8x8xf32> to vector<8x8xf32>
      %20 = vector.shape_cast %17 : vector<8x8xf32> to vector<1x8x8xf32>
      tpu.vector_store %arg3[%c0_14, %c0_15, %c0_16], %20 {strides = array<i32>} : memref<1x8x8xf32, #tpu.memory_space<vmem>>, vector<1x8x8xf32>,
    } else {
    }
    return
  }
  func.func @transform_0(%arg0: i32, %arg1: i32) -> (i32, i32) {
    %c1_i32 = arith.constant 1 : i32
    %0 = arith.muli %arg0, %c1_i32 : i32
    %1 = arith.addi %0, %arg1 : i32
    %c0_i32 = arith.constant 0 : i32
    %2 = arith.minsi %1, %c0_i32 : i32
    %c0_i32_0 = arith.constant 0 : i32
    %c0_i32_1 = arith.constant 0 : i32
    return %c0_i32_0, %2 : i32, i32
  }
  func.func @transform_1(%arg0: i32, %arg1: i32) -> (i32, i32, i32) {
    %c0_i32 = arith.constant 0 : i32
    %c0_i32_0 = arith.constant 0 : i32
    %c0_i32_1 = arith.constant 0 : i32
    return %arg0, %c0_i32, %c0_i32_0 : i32, i32, i32
  }
}

</mosaic_0001>

<llo_original>
// kernel: tpu_custom_call.1
$region0: #{tpu_custom_call.1}
  #allocation0 [shape = 'u32[]', space=smem, size = 0x4, offset = 0x4, fixed_abs, tag = 'smem constant byte address 0x4 - core index']
  #allocation1 [shape = 'u32[72,128]{1,0:T(1,128)}', space=vmem, size = 0x9000, scoped, tag = 'internal scratch']
  %s0 = inlined_call_operand.hbm [shape: bf16[8,256], index: 0, kind: input, shape index: {}]
  %s1 = inlined_call_operand.hbm [shape: f32[1,8,8], index: 1, kind: output, shape index: {}]
  %s2 = sld [smem:[#allocation0]]
  $region26: #{tpu_custom_call.1} parent=0
    _
  %s4 = ssub.s32 1, %s2
  %s5 = scalar_select 0, %s4, %s2
  $region1: #{tpu_custom_call.1} parent=0
    #allocation2 [shape = 'u8[4096]{0}', space=vmem, size = 0x1000, scoped, tag = 'input window, operand 0, single buffered']
    #allocation3 [shape = 's32[1]{0}', space=sflag, size = 0x4, scoped, tag = 'scoped memory for tpu_custom_call.1']
    #allocation4 [shape = 's32[1]{0}', space=sflag, size = 0x4, scoped, tag = 'scoped memory for tpu_custom_call.1']
    #allocation5 [shape = 'u8[4096]{0}', space=vmem, size = 0x1000, scoped, tag = 'output window, operand 0, single buffered']
    %6 = vsyncpa [#allocation3], 0
    %7 = vsyncpa [#allocation4], 0
    // Predicated region
    $region2: #{tpu_custom_call.1} parent=1 // pred_check
      _
    $region3: #{tpu_custom_call.1} parent=1 // pred_check_branch
      %9 = sbr.rel (0) target = $region5
    $region4: #{tpu_custom_call.1} parent=1 // pred_region
      %s10 = sadd.s32 0, 0
      %p11 = scmp.lt.s32.totalorder %s10, 0
      %s12 = scalar_select %p11, %s10, 0
      %s13 = smul.u32 2, %s12
      %15 = vsyncadd [#allocation3], 0
      %s16 = smul.addr %s13, 4
      %s17 = scalar_lea.hbm %s0, %s16
      %s19 = sshll.u32 %s17, 4
      %s20 = int_to_ptr.hbm [resolvable:$true] %s19
      %s21 = sshll.u32 [#allocation2], 4
      %s22 = int_to_ptr.vmem [resolvable:$true] %s21
      %24 = dma.hbm_to_vmem [thread:$0]  %s20, 128, %s22, [#allocation3]
    $region5: #{tpu_custom_call.1} parent=1 // pred_fallthru
      _
    // Predicated region
    $region6: #{tpu_custom_call.1} parent=1 // pred_check
      _
    $region7: #{tpu_custom_call.1} parent=1 // pred_check_branch
      %26 = sbr.rel (0) target = $region9
    $region8: #{tpu_custom_call.1} parent=1 // pred_region
      %28 = dma.done [#allocation3], 128
    $region9: #{tpu_custom_call.1} parent=1 // pred_fallthru
      _
    %s29 = sadd.s32 0, 0
    %p30 = scmp.lt.s32.totalorder %s29, 0
    %s31 = scalar_select %p30, %s29, 0
    %s32 = smul.u32 2, %s31
    %p34 = scmp.eq.s32.totalorder 0, 0
    // Predicated region
    $region10: #{tpu_custom_call.1} parent=1 // pred_check
      %p35 = pneg %p34
    $region11: #{tpu_custom_call.1} parent=1 // pred_check_branch
      %37 = sbr.rel (%p35) target = $region13
    $region12: #{tpu_custom_call.1} parent=1 // pred_region
      %vm38 = vcmask 64512
      %39 = vst.msk [vmem:[#allocation5] sm:$0xff] %vm38, 0.0
    $region13: #{tpu_custom_call.1} parent=1 // pred_fallthru
      _
    %v40 = vld [vmem:[#allocation2] sm:$0xff]
    %v41 = vld [vmem:[#allocation5] sm:$0xff]
    %v43 = vunpack.c.l.b16 %v40
    %v44 = vunpack.c.h.b16 %v40
    %v45 = vpack.c.b16 %v43, %v43
    %v46 = vpack.c.b16 %v44, %v44
    %49 = vmatpush.bf16.xpose.msra.mxu0 0
    %50 = vmatpush.bf16.xpose.msra.mxu0 0
    %51 = vmatpush.bf16.xpose.msra.mxu0 0
    %52 = vmatpush.bf16.xpose.msra.mxu0 0
    %53 = vmatpush.bf16.xpose.msra.mxu0 0
    %54 = vmatpush.bf16.xpose.msra.mxu0 0
    %55 = vmatpush.bf16.xpose.msra.mxu0 0
    %56 = vmatpush.bf16.xpose.msra.mxu0 %v45
    %57 = vmatmul.bf16.gmra.mxu0 %v45
    %v58 = vpop.f32.mrf.mxu0
    %v59 = vadd.f32 0.0, %v58
    %v60 = vpop.f32.mrf.mxu0
    %61 = vdwg.mxu0
    %62 = vmatpush.bf16.xpose.msra.mxu0 0
    %63 = vmatpush.bf16.xpose.msra.mxu0 0
    %64 = vmatpush.bf16.xpose.msra.mxu0 0
    %65 = vmatpush.bf16.xpose.msra.mxu0 0
    %66 = vmatpush.bf16.xpose.msra.mxu0 0
    %67 = vmatpush.bf16.xpose.msra.mxu0 0
    %68 = vmatpush.bf16.xpose.msra.mxu0 0
    %69 = vmatpush.bf16.xpose.msra.mxu0 %v46
    %70 = vmatmul.bf16.gmra.mxu0 %v46
    %v71 = vpop.f32.mrf.mxu0
    %v72 = vadd.f32 %v59, %v71
    %v73 = vpop.f32.mrf.mxu0
    %74 = vdwg.mxu0
    %v75 = vadd.f32 %v41, %v72
    %vm76 = vcmask 64512
    %77 = vst.msk [vmem:[#allocation5] sm:$0xff] %vm76, %v75
    // Predicated region
    $region14: #{tpu_custom_call.1} parent=1 // pred_check
      %p78 = pneg %p34
    $region15: #{tpu_custom_call.1} parent=1 // pred_check_branch
      %80 = sbr.rel (%p78) target = $region17
    $region16: #{tpu_custom_call.1} parent=1 // pred_region
      %v81 = vld [vmem:[#allocation5] sm:$0xff]
      %v82 = vmul.f32 %v81, 0.00048828125
      %83 = vst.msk [vmem:[#allocation5] sm:$0xff] %vm76, %v82
    $region17: #{tpu_custom_call.1} parent=1 // pred_fallthru
      _
    // Predicated region
    $region18: #{tpu_custom_call.1} parent=1 // pred_check
      _
    $region19: #{tpu_custom_call.1} parent=1 // pred_check_branch
      %85 = sbr.rel (0) target = $region21
    $region20: #{tpu_custom_call.1} parent=1 // pred_region
      %87 = vsyncadd [#allocation4], 0
      %s89 = sshll.u32 [#allocation5], 4
      %s90 = int_to_ptr.vmem [resolvable:$true] %s89
      %s91 = sshll.u32 %s1, 4
      %s92 = int_to_ptr.hbm [resolvable:$true] %s91
      %94 = dma.vmem_to_hbm [thread:$0]  %s90, 128, %s92, [#allocation4]
    $region21: #{tpu_custom_call.1} parent=1 // pred_fallthru
      _
    // Predicated region
    $region22: #{tpu_custom_call.1} parent=1 // pred_check
      _
    $region23: #{tpu_custom_call.1} parent=1 // pred_check_branch
      %96 = sbr.rel (0) target = $region25
    $region24: #{tpu_custom_call.1} parent=1 // pred_region
      %98 = dma.done [#allocation4], 128
    $region25: #{tpu_custom_call.1} parent=1 // pred_fallthru
      _
    %99 = vsyncpa [#allocation3], 1
    %100 = vsyncpa [#allocation4], 1

</llo_original>
